<compile_context>
chip_gen: v7x
topology: tpu7x:2x2x1
jax: 0.10.0
libtpu: 0.0.40
codegen_flags: <defaults>
</compile_context>

<pallas_src>
import functools
import math

import jax
import jax.numpy as jnp
from jax.experimental import pallas as pl
from jax.experimental.pallas import tpu as pltpu


def _round_up(x, m):
    return (x + m - 1) // m * m


def _proj_logsoftmax_kernel(x_ref, w_ref, b_ref, o_ref, m_scr, l_scr, lse_scr, *, nv):
    # x_ref: (TM, D) compute dtype    w_ref: (D, TV) compute dtype
    # b_ref: (nv, TV) f32 resident bias table
    # o_ref: (TM, TV) out dtype, block index (i, max(v - nv, 0))
    # m_scr / l_scr / lse_scr: (TM, 1) f32 running stats (persist across steps)
    v = pl.program_id(1)
    in_lse_pass = v < nv

    @pl.when(v == 0)
    def _init():
        m_scr[...] = jnp.full_like(m_scr, -jnp.inf)
        l_scr[...] = jnp.zeros_like(l_scr)

    # Vocab-tile index for this step + its bias row from the resident table.
    j = jnp.where(in_lse_pass, v, v - nv)
    bias = b_ref[pl.ds(j, 1), :]                       # (1, TV) f32

    # MXU matmul (bf16 operands, f32 accumulation) + bias add.
    logits = jnp.dot(x_ref[...], w_ref[...], preferred_element_type=jnp.float32)
    logits = logits + bias                             # (TM, TV) f32

    @pl.when(in_lse_pass)
    def _accumulate():
        m_prev = m_scr[...]
        m_new = jnp.maximum(m_prev, jnp.max(logits, axis=-1, keepdims=True))
        l_scr[...] = (l_scr[...] * jnp.exp(m_prev - m_new)
                      + jnp.sum(jnp.exp(logits - m_new), axis=-1, keepdims=True))
        m_scr[...] = m_new

    @pl.when(v == nv - 1)
    def _finish_lse():
        lse_scr[...] = m_scr[...] + jnp.log(l_scr[...])   # per-row logsumexp

    @pl.when(jnp.logical_not(in_lse_pass))
    def _write():
        o_ref[...] = (logits - lse_scr[...]).astype(o_ref.dtype)


def _vmem_bytes_needed(tm, tv, d, vocab, cbytes, obytes):
    vp = _round_up(vocab, tv)
    nvt = vp // tv
    return (2 * tm * d * cbytes              # x tile, double-buffered
            + 2 * d * tv * cbytes            # weight tiles, double-buffered
            + 2 * tm * tv * obytes           # output tiles, double-buffered
            + _round_up(nvt, 8) * tv * 4     # resident bias table (sublane-padded)
            + 3 * tm * 128 * 4)              # (TM, 1) f32 stats (lane-padded)


def projection_layer(x, weight, bias, *, tile_rows=512, tile_v=1024,
                     compute_dtype=jnp.bfloat16, out_dtype=None):
    """log_softmax(x @ weight + bias, axis=-1).

    x: (B, S, D); weight: (D, V); bias: (V,). Returns (B, S, V) in `out_dtype`
    (defaults to x.dtype; pass jnp.bfloat16 to halve output HBM writeback).
    """
    B, S, D = x.shape
    Dw, V = weight.shape
    assert Dw == D
    if out_dtype is None:
        out_dtype = x.dtype
    # Note: padded vocab columns carry ~-1e30 values pre-slice; keep out_dtype f32/bf16.

    rows = B * S
    cbytes = jnp.dtype(compute_dtype).itemsize
    obytes = jnp.dtype(out_dtype).itemsize

    # Generation-aware VMEM budget (v7x: 64 MiB/TC; v5e/v6e: 128 MiB).
    try:
        vmem_cap = int(pltpu.get_tpu_info().vmem_capacity_bytes)
    except Exception:
        vmem_cap = 64 * 2 ** 20       # conservative (v7x-sized) fallback
    vmem_budget = int(0.80 * vmem_cap)

    # Tile sizes: big MXU-friendly row tile (bandwidth lever), lane-aligned vocab tile.
    if rows >= tile_rows:
        TM = _round_up(tile_rows, 256)          # multiple of MXU dim
    else:
        TM = _round_up(rows, 16)                # bf16 sublane packing for small inputs
    TV = _round_up(min(tile_v, _round_up(V, 128)), 128)

    # Shrink TV first (step-count lever), then TM (bandwidth lever), to fit VMEM.
    while TV > 512 and _vmem_bytes_needed(TM, TV, D, V, cbytes, obytes) > vmem_budget:
        TV = max(512, _round_up(TV // 2, 128))
    while TM > 256 and _vmem_bytes_needed(TM, TV, D, V, cbytes, obytes) > vmem_budget:
        TM = max(256, _round_up(TM // 2, 16))

    rows_p = _round_up(rows, TM)
    Vp = _round_up(V, TV)
    nv = Vp // TV

    # Operand prep.
    x2d = x.reshape(rows, D)
    if rows_p != rows:
        x2d = jnp.pad(x2d, ((0, rows_p - rows), (0, 0)))
    w_p = weight if Vp == V else jnp.pad(weight, ((0, 0), (0, Vp - V)))
    # Padded vocab columns get a huge negative bias so their exp() contribution is 0.
    b_p = bias if Vp == V else jnp.pad(bias, (0, Vp - V), constant_values=-1e30)

    x2d = x2d.astype(compute_dtype)
    w_p = w_p.astype(compute_dtype)
    b_tbl = b_p.reshape(nv, TV).astype(jnp.float32)    # resident bias table

    kernel = functools.partial(_proj_logsoftmax_kernel, nv=nv)

    out2d = pl.pallas_call(
        kernel,
        out_shape=jax.ShapeDtypeStruct((rows_p, Vp), out_dtype),
        grid_spec=pltpu.PrefetchScalarGridSpec(
            num_scalar_prefetch=0,
            grid=(rows_p // TM, 2 * nv),                         # vocab sweeps last (carry)
            in_specs=[
                pl.BlockSpec((TM, D), lambda i, v: (i, 0)),      # x rows (resident over v)
                pl.BlockSpec((D, TV), lambda i, v: (0, v % nv)), # streamed weight tile
                pl.BlockSpec((nv, TV), lambda i, v: (0, 0)),     # resident bias table
            ],
            out_specs=pl.BlockSpec(
                (TM, TV), lambda i, v: (i, jnp.maximum(v - nv, 0))),
            scratch_shapes=[
                pltpu.VMEM((TM, 1), jnp.float32),   # running max
                pltpu.VMEM((TM, 1), jnp.float32),   # running sum-exp
                pltpu.VMEM((TM, 1), jnp.float32),   # logsumexp
            ],
        ),
        compiler_params=pltpu.CompilerParams(
            dimension_semantics=("parallel", "arbitrary"),
            vmem_limit_bytes=vmem_budget,
        ),
    )(x2d, w_p, b_tbl)

    return out2d[:rows, :V].reshape(B, S, V)


def init_params(d_model, vocab_size, key):
    # Mirrors nn.Linear default init: U(-1/sqrt(d_model), 1/sqrt(d_model)).
    kw, kb = jax.random.split(key)
    bound = 1.0 / math.sqrt(d_model)
    # PyTorch W: (vocab, d_model); stored transposed as (d_model, vocab) for x @ W.
    w = jax.random.uniform(kw, (d_model, vocab_size), jnp.float32, -bound, bound)
    b = jax.random.uniform(kb, (vocab_size,), jnp.float32, -bound, bound)
    return w, b


if __name__ == "__main__":
    B, S, D, V = 2, 8, 32, 128
    key = jax.random.PRNGKey(0)
    kx, kp = jax.random.split(key)
    x = jax.random.normal(kx, (B, S, D), jnp.float32)
    w, b = init_params(D, V, kp)

    out = projection_layer(x, w, b)
    jax.block_until_ready(out)

    # Reference with the same bf16 operand rounding as the kernel, f32 accumulation.
    xb = x.reshape(-1, D).astype(jnp.bfloat16).astype(jnp.float32)
    wb = w.astype(jnp.bfloat16).astype(jnp.float32)
    ref = jax.nn.log_softmax(xb @ wb + b, axis=-1).reshape(B, S, V)

    assert out.shape == (B, S, V)
    assert out.dtype == x.dtype
    assert jnp.allclose(out.astype(jnp.float32), ref, atol=1e-3, rtol=1e-3), "mismatch vs reference"

    print("KERNEL_OK")
</pallas_src>

<mosaic_0001>
module attributes {stable_mosaic.version = 11 : i64} {
  func.func @_proj_logsoftmax_kernel(%arg0: i32, %arg1: i32, %arg2: memref<16x32xbf16, #tpu.memory_space<vmem>>, %arg3: memref<32x128xbf16, #tpu.memory_space<vmem>>, %arg4: memref<1x128xf32, #tpu.memory_space<vmem>>, %arg5: memref<16x128xf32, #tpu.memory_space<vmem>>, %arg6: memref<16x1xf32, #tpu.memory_space<vmem>>, %arg7: memref<16x1xf32, #tpu.memory_space<vmem>>, %arg8: memref<16x1xf32, #tpu.memory_space<vmem>>) attributes {dimension_semantics = [#tpu.dimension_semantics<parallel>, #tpu.dimension_semantics<arbitrary>], iteration_bounds = array<i64: 1, 2>, scalar_prefetch = 0 : i64, scratch_operands = 3 : i64, tpu.core_type = #tpu.core_type<tc>, window_params = [{transform_indices = @transform_0, window_bounds = array<i64: 16, 32>}, {transform_indices = @transform_1, window_bounds = array<i64: 32, 128>}, {pipeline_mode = #tpu.pipeline_mode<synchronous>, transform_indices = @transform_2, window_bounds = array<i64: 1, 128>}, {transform_indices = @transform_3, window_bounds = array<i64: 16, 128>}]} {
    %c1_i32 = arith.constant 1 : i32
    %0 = arith.cmpi slt, %arg1, %c1_i32 : i32
    %c0_i32 = arith.constant 0 : i32
    %1 = arith.cmpi eq, %arg1, %c0_i32 : i32
    %2 = arith.extui %1 : i1 to i32
    %c0_i32_0 = arith.constant 0 : i32
    %3 = arith.cmpi ne, %2, %c0_i32_0 : i32
    scf.if %3 {
      %cst_10 = arith.constant 0xFF800000 : f32
      %21 = vector.broadcast %cst_10 : f32 to vector<16x1xf32>
      %c0_11 = arith.constant 0 : index
      %c0_12 = arith.constant 0 : index
      %22 = vector.load %arg6[%c0_11, %c0_12] : memref<16x1xf32, #tpu.memory_space<vmem>>, vector<16x1xf32>
      tpu.vector_store %arg6[%c0_11, %c0_12], %21 {strides = array<i32>} : memref<16x1xf32, #tpu.memory_space<vmem>>, vector<16x1xf32>,
      %cst_13 = arith.constant 0.000000e+00 : f32
      %23 = vector.broadcast %cst_13 : f32 to vector<16x1xf32>
      %c0_14 = arith.constant 0 : index
      %c0_15 = arith.constant 0 : index
      %24 = vector.load %arg7[%c0_14, %c0_15] : memref<16x1xf32, #tpu.memory_space<vmem>>, vector<16x1xf32>
      tpu.vector_store %arg7[%c0_14, %c0_15], %23 {strides = array<i32>} : memref<16x1xf32, #tpu.memory_space<vmem>>, vector<16x1xf32>,
    } else {
    }
    %c1_i32_1 = arith.constant 1 : i32
    %4 = arith.subi %arg1, %c1_i32_1 : i32
    %5 = arith.select %0, %arg1, %4 : i32
    %6 = arith.index_cast %5 : i32 to index
    %c0 = arith.constant 0 : index
    %7 = vector.load %arg4[%6, %c0] : memref<1x128xf32, #tpu.memory_space<vmem>>, vector<1x128xf32>
    %c0_2 = arith.constant 0 : index
    %c0_3 = arith.constant 0 : index
    %8 = vector.load %arg2[%c0_2, %c0_3] : memref<16x32xbf16, #tpu.memory_space<vmem>>, vector<16x32xbf16>
    %c0_4 = arith.constant 0 : index
    %c0_5 = arith.constant 0 : index
    %9 = vector.load %arg3[%c0_4, %c0_5] : memref<32x128xbf16, #tpu.memory_space<vmem>>, vector<32x128xbf16>
    %cst = arith.constant dense<0.000000e+00> : vector<16x128xf32>
    %10 = tpu.matmul %8, %9, %cst {dimension_numbers = #tpu.dot_dimension_numbers<[1], [0], [0], [1], [0, 0, 1, 1], [], []>} : vector<16x32xbf16>, vector<32x128xbf16>, vector<16x128xf32> -> vector<16x128xf32>
    %11 = vector.broadcast %7 : vector<1x128xf32> to vector<16x128xf32>
    %12 = arith.addf %10, %11 : vector<16x128xf32>
    %13 = arith.extui %0 : i1 to i32
    %c0_i32_6 = arith.constant 0 : i32
    %14 = arith.cmpi ne, %13, %c0_i32_6 : i32
    scf.if %14 {
      %c0_10 = arith.constant 0 : index
      %c0_11 = arith.constant 0 : index
      %21 = vector.load %arg6[%c0_10, %c0_11] : memref<16x1xf32, #tpu.memory_space<vmem>>, vector<16x1xf32>
      %cst_12 = arith.constant dense<0xFF800000> : vector<16xf32>
      %22 = vector.multi_reduction <maximumf>, %12, %cst_12 [1] : vector<16x128xf32> to vector<16xf32>
      %23 = vector.shape_cast %22 : vector<16xf32> to vector<16x1xf32>
      %24 = arith.maximumf %21, %23 : vector<16x1xf32>
      %c0_13 = arith.constant 0 : index
      %c0_14 = arith.constant 0 : index
      %25 = vector.load %arg7[%c0_13, %c0_14] : memref<16x1xf32, #tpu.memory_space<vmem>>, vector<16x1xf32>
      %26 = arith.subf %21, %24 : vector<16x1xf32>
      %27 = math.exp %26 : vector<16x1xf32>
      %28 = arith.mulf %25, %27 : vector<16x1xf32>
      %29 = vector.broadcast %24 : vector<16x1xf32> to vector<16x128xf32>
      %30 = arith.subf %12, %29 : vector<16x128xf32>
      %31 = math.exp %30 : vector<16x128xf32>
      %cst_15 = arith.constant dense<0.000000e+00> : vector<16xf32>
      %32 = vector.multi_reduction <add>, %31, %cst_15 [1] : vector<16x128xf32> to vector<16xf32>
      %33 = vector.shape_cast %32 : vector<16xf32> to vector<16x1xf32>
      %34 = arith.addf %28, %33 : vector<16x1xf32>
      %c0_16 = arith.constant 0 : index
      %c0_17 = arith.constant 0 : index
      %35 = vector.load %arg7[%c0_16, %c0_17] : memref<16x1xf32, #tpu.memory_space<vmem>>, vector<16x1xf32>
      tpu.vector_store %arg7[%c0_16, %c0_17], %34 {strides = array<i32>} : memref<16x1xf32, #tpu.memory_space<vmem>>, vector<16x1xf32>,
      %c0_18 = arith.constant 0 : index
      %c0_19 = arith.constant 0 : index
      %36 = vector.load %arg6[%c0_18, %c0_19] : memref<16x1xf32, #tpu.memory_space<vmem>>, vector<16x1xf32>
      tpu.vector_store %arg6[%c0_18, %c0_19], %24 {strides = array<i32>} : memref<16x1xf32, #tpu.memory_space<vmem>>, vector<16x1xf32>,
    } else {
    }
    %c0_i32_7 = arith.constant 0 : i32
    %15 = arith.cmpi eq, %arg1, %c0_i32_7 : i32
    %16 = arith.extui %15 : i1 to i32
    %c0_i32_8 = arith.constant 0 : i32
    %17 = arith.cmpi ne, %16, %c0_i32_8 : i32
    scf.if %17 {
      %c0_10 = arith.constant 0 : index
      %c0_11 = arith.constant 0 : index
      %21 = vector.load %arg6[%c0_10, %c0_11] : memref<16x1xf32, #tpu.memory_space<vmem>>, vector<16x1xf32>
      %c0_12 = arith.constant 0 : index
      %c0_13 = arith.constant 0 : index
      %22 = vector.load %arg7[%c0_12, %c0_13] : memref<16x1xf32, #tpu.memory_space<vmem>>, vector<16x1xf32>
      %23 = math.log %22 : vector<16x1xf32>
      %24 = arith.addf %21, %23 : vector<16x1xf32>
      %c0_14 = arith.constant 0 : index
      %c0_15 = arith.constant 0 : index
      %25 = vector.load %arg8[%c0_14, %c0_15] : memref<16x1xf32, #tpu.memory_space<vmem>>, vector<16x1xf32>
      tpu.vector_store %arg8[%c0_14, %c0_15], %24 {strides = array<i32>} : memref<16x1xf32, #tpu.memory_space<vmem>>, vector<16x1xf32>,
    } else {
    }
    %true = arith.constant true
    %18 = arith.xori %0, %true : i1
    %19 = arith.extui %18 : i1 to i32
    %c0_i32_9 = arith.constant 0 : i32
    %20 = arith.cmpi ne, %19, %c0_i32_9 : i32
    scf.if %20 {
      %c0_10 = arith.constant 0 : index
      %c0_11 = arith.constant 0 : index
      %21 = vector.load %arg8[%c0_10, %c0_11] : memref<16x1xf32, #tpu.memory_space<vmem>>, vector<16x1xf32>
      %22 = vector.broadcast %21 : vector<16x1xf32> to vector<16x128xf32>
      %23 = arith.subf %12, %22 : vector<16x128xf32>
      %c0_12 = arith.constant 0 : index
      %c0_13 = arith.constant 0 : index
      %24 = vector.load %arg5[%c0_12, %c0_13] : memref<16x128xf32, #tpu.memory_space<vmem>>, vector<16x128xf32>
      tpu.vector_store %arg5[%c0_12, %c0_13], %23 {strides = array<i32>} : memref<16x128xf32, #tpu.memory_space<vmem>>, vector<16x128xf32>,
    } else {
    }
    return
  }
  func.func @transform_0(%arg0: i32, %arg1: i32) -> (i32, i32) {
    %c0_i32 = arith.constant 0 : i32
    %c0_i32_0 = arith.constant 0 : i32
    return %arg0, %c0_i32 : i32, i32
  }
  func.func @transform_1(%arg0: i32, %arg1: i32) -> (i32, i32) {
    %c1_i32 = arith.constant 1 : i32
    %c0_i32 = arith.constant 0 : i32
    %0 = arith.cmpi eq, %c1_i32, %c0_i32 : i32
    %c1_i32_0 = arith.constant 1 : i32
    %1 = arith.select %0, %c1_i32_0, %c1_i32 : i32
    %2 = arith.remsi %arg1, %1 : i32
    %c0_i32_1 = arith.constant 0 : i32
    %3 = arith.cmpi ne, %2, %c0_i32_1 : i32
    %c0_i32_2 = arith.constant 0 : i32
    %4 = arith.cmpi slt, %2, %c0_i32_2 : i32
    %c0_i32_3 = arith.constant 0 : i32
    %5 = arith.cmpi slt, %1, %c0_i32_3 : i32
    %6 = arith.xori %4, %5 : i1
    %7 = arith.andi %6, %3 : i1
    %8 = arith.addi %2, %1 : i32
    %9 = arith.select %7, %8, %2 : i32
    %c0_i32_4 = arith.constant 0 : i32
    %c0_i32_5 = arith.constant 0 : i32
    return %c0_i32_4, %9 : i32, i32
  }
  func.func @transform_2(%arg0: i32, %arg1: i32) -> (i32, i32) {
    %c0_i32 = arith.constant 0 : i32
    %c0_i32_0 = arith.constant 0 : i32
    %c0_i32_1 = arith.constant 0 : i32
    return %c0_i32, %c0_i32_0 : i32, i32
  }
  func.func @transform_3(%arg0: i32, %arg1: i32) -> (i32, i32) {
    %c1_i32 = arith.constant 1 : i32
    %0 = arith.subi %arg1, %c1_i32 : i32
    %c0_i32 = arith.constant 0 : i32
    %1 = arith.maxsi %0, %c0_i32 : i32
    %c0_i32_0 = arith.constant 0 : i32
    return %arg0, %1 : i32, i32
  }
}

</mosaic_0001>

<llo_original>
// kernel: tpu_custom_call.1
$region0: #{tpu_custom_call.1}
  #allocation0 [shape = 'u32[]', space=smem, size = 0x4, offset = 0x4, fixed_abs, tag = 'smem constant byte address 0x4 - core index']
  #allocation1 [shape = 'u32[144,128]{1,0:T(1,128)}', space=vmem, size = 0x12000, scoped, tag = 'internal scratch']
  #allocation2 [shape = 'f32[16,1]{1,0:T(8,128)}', space=vmem, size = 0x2000, scoped, tag = 'scratch operand']
  #allocation3 [shape = 'f32[16,1]{1,0:T(8,128)}', space=vmem, size = 0x2000, scoped, tag = 'scratch operand']
  #allocation4 [shape = 'f32[16,1]{1,0:T(8,128)}', space=vmem, size = 0x2000, scoped, tag = 'scratch operand']
  %s0 = inlined_call_operand.hbm [shape: bf16[16,32], index: 0, kind: input, shape index: {}]
  %s1 = inlined_call_operand.hbm [shape: bf16[32,128], index: 1, kind: input, shape index: {}]
  %s2 = inlined_call_operand.vmem [shape: f32[1,128], index: 2, kind: input, shape index: {}]
  %s3 = inlined_call_operand.hbm [shape: f32[16,128], index: 3, kind: output, shape index: {}]
  %s4 = sld [smem:[#allocation0]]
  $region69: #{tpu_custom_call.1} parent=0
    _
  %s6 = ssub.s32 1, %s4
  %s7 = scalar_select 0, %s6, %s4
  $region1: #{tpu_custom_call.1} parent=0
    #allocation5 [shape = 'u8[4096]{0}', space=vmem, size = 0x1000, scoped, tag = 'input window, operand 0, single buffered']
    #allocation6 [shape = 's32[2]{0}', space=sflag, size = 0x8, scoped, tag = 'scoped memory for tpu_custom_call.1']
    #allocation7 [shape = 's32[2]{0}', space=sflag, size = 0x8, scoped, tag = 'scoped memory for tpu_custom_call.1']
    #allocation8 [shape = 'u8[8192]{0}', space=vmem, size = 0x2000, scoped, tag = 'input window, operand 1, single buffered']
    #allocation9 [shape = 's32[1]{0}', space=sflag, size = 0x4, scoped, tag = 'scoped memory for tpu_custom_call.1']
    #allocation10 [shape = 'u8[16384]{0}', space=vmem, size = 0x4000, scoped, tag = 'output window, operand 0']
    %8 = vsyncpa [#allocation6], 0
    %9 = vsyncpa [#allocation9], 0
    %10 = vsyncpa [#allocation7], 0
    %s11 = scalar_lea.sflag [#allocation7], 1
    %12 = vsyncpa %s11, 0
    loop: start=0, step=1, limit=4
    $region2: #{tpu_custom_call.1} parent=1 // loop_pre_header
      _
    $region3: #{tpu_custom_call.1} parent=1 // loop_header
      %s14 = sphi 0, %s18
      %p15 = scmp.ge.s32.totalorder %s14, 4
      %s21 = sphi 0, %s33
      %s22 = sphi 0, %s29
      %s23 = sphi 0, %s21
      %s24 = sphi 0, %s22
      %s25 = sphi 0, %s23
      %s26 = sphi 0, %s24
      %s36 = sphi 0, %s38
      %s39 = sphi 0, %s36
      %s40 = sphi 0, %s39
      %s56 = sphi 0, %s40
      %s60 = sphi 0, %s60
      %s62 = sphi 0, %s60
      %s63 = sphi 0, %s62
      %s77 = sphi 0, %s63
      %s81 = sphi 0, %s81
      %s83 = sphi 0, %s81
      %s84 = sphi 0, %s83
      %s98 = sphi 0, %s84
      %s112 = sphi 0, %s114
      %s115 = sphi 0, %s112
      %s116 = sphi 0, %s115
      %s132 = sphi 0, %s116
    $region4: #{tpu_custom_call.1} parent=1 // loop_header_branch
      %17 = sbr.rel (%p15) target = $region8
    $region5: #{tpu_custom_call.1} parent=1 // loop_body
      %s19 = ssub.s32 %s14, 1
      %s20 = ssub.s32 %s14, 2
      %s27 = sadd.s32 1, %s22
      %p28 = scmp.ge.s32.totalorder %s27, 2
      %s29 = scalar_select %p28, 0, %s27
      %s30 = sadd.s32 1, %s21
      %s31 = scalar_select %p28, %s30, %s21
      %p32 = scmp.ge.s32.totalorder %s31, 1
      %s33 = scalar_select %p32, 0, %s31
      %s34 = ssub.s32 %s21, %s33
      %p35 = scmp.eq.s32.totalorder %s34, 0
      %s37 = sadd.s32 %s36, 1
      %s38 = scalar_select %p35, %s36, %s37
      %p41 = pneg %p35
      %p42 = scmp.eq.s32.totalorder %s14, 1
      %p43 = por %p41, %p42
      %p44 = scmp.ne.s32.totalorder %s36, %s39
      %p45 = scmp.eq.s32.totalorder %s14, 0
      %p46 = por %p44, %p45
      %p47 = scmp.ne.s32.totalorder %s36, %s39
      %p48 = scmp.eq.s32.totalorder %s19, 1
      %p49 = por %p47, %p48
      %p50 = scmp.ne.s32.totalorder %s39, %s40
      %p51 = scmp.eq.s32.totalorder %s19, 0
      %p52 = por %p50, %p51
      %p53 = scmp.ne.s32.totalorder %s39, %s40
      %p54 = scmp.eq.s32.totalorder %s20, 1
      %p55 = por %p53, %p54
      %p57 = scmp.ne.s32.totalorder %s40, %s56
      %p58 = scmp.eq.s32.totalorder %s20, 0
      %p59 = por %p57, %p58
      %s61 = sadd.s32 %s60, 1
      %p64 = scmp.eq.s32.totalorder %s14, 1
      %p65 = scmp.ne.s32.totalorder %s60, %s62
      %p66 = scmp.eq.s32.totalorder %s14, 0
      %p67 = por %p65, %p66
      %p68 = scmp.ne.s32.totalorder %s60, %s62
      %p69 = scmp.eq.s32.totalorder %s19, 1
      %p70 = por %p68, %p69
      %p71 = scmp.ne.s32.totalorder %s62, %s63
      %p72 = scmp.eq.s32.totalorder %s19, 0
      %p73 = por %p71, %p72
      %p74 = scmp.ne.s32.totalorder %s62, %s63
      %p75 = scmp.eq.s32.totalorder %s20, 1
      %p76 = por %p74, %p75
      %p78 = scmp.ne.s32.totalorder %s63, %s77
      %p79 = scmp.eq.s32.totalorder %s20, 0
      %p80 = por %p78, %p79
      %s82 = sadd.s32 %s81, 1
      %p85 = scmp.eq.s32.totalorder %s14, 1
      %p86 = scmp.ne.s32.totalorder %s81, %s83
      %p87 = scmp.eq.s32.totalorder %s14, 0
      %p88 = por %p86, %p87
      %p89 = scmp.ne.s32.totalorder %s81, %s83
      %p90 = scmp.eq.s32.totalorder %s19, 1
      %p91 = por %p89, %p90
      %p92 = scmp.ne.s32.totalorder %s83, %s84
      %p93 = scmp.eq.s32.totalorder %s19, 0
      %p94 = por %p92, %p93
      %p95 = scmp.ne.s32.totalorder %s83, %s84
      %p96 = scmp.eq.s32.totalorder %s20, 1
      %p97 = por %p95, %p96
      %p99 = scmp.ne.s32.totalorder %s84, %s98
      %p100 = scmp.eq.s32.totalorder %s20, 0
      %p101 = por %p99, %p100
      %s102 = ssub.s32 %s22, 1
      %p103 = scmp.gt.s32.totalorder %s102, 0
      %s104 = scalar_select %p103, %s102, 0
      %s105 = ssub.s32 %s29, 1
      %p106 = scmp.gt.s32.totalorder %s105, 0
      %s107 = scalar_select %p106, %s105, 0
      %s108 = ssub.s32 %s21, %s33
      %s109 = ssub.s32 %s104, %s107
      %s110 = sor.u32 %s108, %s109
      %p111 = scmp.eq.s32.totalorder %s110, 0
      %s113 = sadd.s32 %s112, 1
      %s114 = scalar_select %p111, %s112, %s113
      %p117 = pneg %p111
      %p118 = scmp.eq.s32.totalorder %s14, 1
      %p119 = por %p117, %p118
      %p120 = scmp.ne.s32.totalorder %s112, %s115
      %p121 = scmp.eq.s32.totalorder %s14, 0
      %p122 = por %p120, %p121
      %p123 = scmp.ne.s32.totalorder %s112, %s115
      %p124 = scmp.eq.s32.totalorder %s19, 1
      %p125 = por %p123, %p124
      %p126 = scmp.ne.s32.totalorder %s115, %s116
      %p127 = scmp.eq.s32.totalorder %s19, 0
      %p128 = por %p126, %p127
      %p129 = scmp.ne.s32.totalorder %s115, %s116
      %p130 = scmp.eq.s32.totalorder %s20, 1
      %p131 = por %p129, %p130
      %p133 = scmp.ne.s32.totalorder %s116, %s132
      %p134 = scmp.eq.s32.totalorder %s20, 0
      %p135 = por %p133, %p134
      %p136 = scmp.le.s32.totalorder 1, %s14
      %p137 = scmp.lt.s32.totalorder %s14, 3
      %p138 = pnand %p136, %p137
      %p139 = pneg %p138
      // Predicated region
      $region9: #{tpu_custom_call.1} parent=5 // pred_check
        _
      $region10: #{tpu_custom_call.1} parent=5 // pred_check_branch
        %141 = sbr.rel (%p138) target = $region12
      $region11: #{tpu_custom_call.1} parent=5 // pred_region
        %s142 = ssub.s32 %s14, 1
        // Predicated region
        $region13: #{tpu_custom_call.1} parent=11 // pred_check
          %p143 = pneg %p52
        $region14: #{tpu_custom_call.1} parent=11 // pred_check_branch
          %145 = sbr.rel (%p143) target = $region16
        $region15: #{tpu_custom_call.1} parent=11 // pred_region
          %s146 = smul.u32 2, %s23
          %s148 = ssub.s32 128, 128
          %149 = vsyncadd [#allocation6], %s148
          %s150 = smul.addr %s146, 64
          %s151 = scalar_lea.hbm %s0, %s150
          %s152 = sshll.u32 [#allocation5], 4
          %s153 = int_to_ptr.vmem [resolvable:$true] %s152
          %158 = dma.hbm_to_vmem [thread:$0]  %s151, 128, %s153, [#allocation6], 64, 64, 4
        $region16: #{tpu_custom_call.1} parent=11 // pred_fallthru
          _
        // Predicated region
        $region17: #{tpu_custom_call.1} parent=11 // pred_check
          %p159 = pneg %p73
        $region18: #{tpu_custom_call.1} parent=11 // pred_check_branch
          %161 = sbr.rel (%p159) target = $region20
        $region19: #{tpu_custom_call.1} parent=11 // pred_region
          %s163 = ssub.s32 256, 256
          %164 = vsyncadd [#allocation9], %s163
          %s165 = sshll.u32 [#allocation8], 4
          %s166 = int_to_ptr.vmem [resolvable:$true] %s165
          %171 = dma.hbm_to_vmem [thread:$0]  %s1, 256, %s166, [#allocation9], 64, 64, 4
        $region20: #{tpu_custom_call.1} parent=11 // pred_fallthru
          _
        // Predicated region
        $region21: #{tpu_custom_call.1} parent=11 // pred_check
          %p172 = pneg %p94
        $region22: #{tpu_custom_call.1} parent=11 // pred_check_branch
          %174 = sbr.rel (%p172) target = $region24
        $region23: #{tpu_custom_call.1} parent=11 // pred_region
          _
        $region24: #{tpu_custom_call.1} parent=11 // pred_fallthru
          _
      $region12: #{tpu_custom_call.1} parent=5 // pred_fallthru
        _
      %p175 = scmp.lt.s32.totalorder %s14, 2
      // Predicated region
      $region25: #{tpu_custom_call.1} parent=5 // pred_check
        %p176 = pneg %p175
      $region26: #{tpu_custom_call.1} parent=5 // pred_check_branch
        %178 = sbr.rel (%p176) target = $region28
      $region27: #{tpu_custom_call.1} parent=5 // pred_region
        _
      $region28: #{tpu_custom_call.1} parent=5 // pred_fallthru
        _
      %p179 = scmp.le.s32.totalorder 1, %s14
      %p180 = scmp.lt.s32.totalorder %s14, 3
      %p181 = pnand %p179, %p180
      %p182 = pneg %p181
      // Predicated region
      $region29: #{tpu_custom_call.1} parent=5 // pred_check
        _
      $region30: #{tpu_custom_call.1} parent=5 // pred_check_branch
        %184 = sbr.rel (%p181) target = $region32
      $region31: #{tpu_custom_call.1} parent=5 // pred_region
        %s185 = ssub.s32 %s14, 1
        // Predicated region
        $region33: #{tpu_custom_call.1} parent=31 // pred_check
          %p186 = pneg %p52
        $region34: #{tpu_custom_call.1} parent=31 // pred_check_branch
          %188 = sbr.rel (%p186) target = $region36
        $region35: #{tpu_custom_call.1} parent=31 // pred_region
          %189 = dma.done [#allocation6], 128
        $region36: #{tpu_custom_call.1} parent=31 // pred_fallthru
          _
        // Predicated region
        $region37: #{tpu_custom_call.1} parent=31 // pred_check
          %p190 = pneg %p73
        $region38: #{tpu_custom_call.1} parent=31 // pred_check_branch
          %192 = sbr.rel (%p190) target = $region40
        $region39: #{tpu_custom_call.1} parent=31 // pred_region
          %193 = dma.done [#allocation9], 256
        $region40: #{tpu_custom_call.1} parent=31 // pred_fallthru
          _
        %p194 = pneg %p52
        %p195 = pneg %p49
        %p196 = pneg %p73
        %p197 = pneg %p70
        %p198 = pneg %p94
        %p199 = pneg %p91
        %p200 = pneg %p128
        %p201 = pneg %p125
        %s202 = sand.u32 %s115, 1
        %s203 = scalar_lea.sflag [#allocation7], %s202
        %s204 = sand.u32 %s115, 1
        %s205 = smul.addr %s204, 16
        %s206 = scalar_lea.vmem [#allocation10], %s205
        %s207 = smul.u32 2, %s23
        %s208 = ssub.s32 %s24, 1
        %p209 = scmp.gt.s32.totalorder %s208, 0
        %s210 = scalar_select %p209, %s208, 0
        %s211 = smul.u32 2, %s23
        %p213 = scmp.lt.s32.totalorder %s24, 1
        %p214 = scmp.eq.s32.totalorder %s24, 0
        // Predicated region
        $region41: #{tpu_custom_call.1} parent=31 // pred_check
          %p215 = pneg %p214
        $region42: #{tpu_custom_call.1} parent=31 // pred_check_branch
          %217 = sbr.rel (%p215) target = $region44
        $region43: #{tpu_custom_call.1} parent=31 // pred_region
          %vm218 = vcmask 7168
          %219 = vst.msk [vmem:[#allocation2] sm:$0xff] %vm218, -inf
          %220 = vst.msk [vmem:[#allocation2 + $0x8] sm:$0xff] %vm218, -inf
          %221 = vst.msk [vmem:[#allocation3] sm:$0xff] %vm218, 0.0
          %222 = vst.msk [vmem:[#allocation3 + $0x8] sm:$0xff] %vm218, 0.0
        $region44: #{tpu_custom_call.1} parent=31 // pred_fallthru
          _
        %s223 = ssub.s32 %s24, 1
        %s224 = scalar_select %p213, %s24, %s223
        %s225 = scalar_lea.vmem %s2, %s224
        %v226 = vld [vmem:[%s225] sm:$0x1]
        %v227 = vld [vmem:[#allocation5] sm:$0xf]
        %v228 = vld [vmem:[#allocation5 + $0x4] sm:$0xf]
        %v229 = vld [vmem:[#allocation8] sm:$0xf]
        %v230 = vld [vmem:[#allocation8 + $0x4] sm:$0xf]
        %v231 = vld [vmem:[#allocation8 + $0x8] sm:$0xf]
        %v232 = vld [vmem:[#allocation8 + $0xc] sm:$0xf]
        %v234 = vlaneseq
        %v235 = vshrl.u32 %v234, 7
        %v236 = vsub.s32 0, %v235
        %v237 = vrot.slane %v226, %v236
        %v241 = vunpack.c.l.b16 %v227
        %v242 = vunpack.c.l.b16 %v228
        %v243 = vpack.c.b16 %v242, %v241
        %v248 = vunpack.c.l.b16 %v229
        %v249 = vunpack.c.l.b16 %v230
        %v250 = vunpack.c.l.b16 %v231
        %v251 = vunpack.c.l.b16 %v232
        %v252 = vpack.c.b16 %v249, %v248
        %v253 = vpack.c.b16 %v251, %v250
        %vm256 = vcmask 261120
        %v258 = vsel %vm256, %v243, 0
        %260 = vmatprep.subr.bf16.mxu0 0
        %261 = vmatpush1.bf16.msra.mxu0 %v252
        %262 = vmatprep.subr.bf16.mxu0 0
        %263 = vmatpush1.bf16.msra.mxu0 %v253
        %264 = vmatprep.subr.bf16.mxu0 0
        %265 = vmatpush1.bf16.msra.mxu0 0
        %266 = vmatprep.subr.bf16.mxu0 0
        %267 = vmatpush1.bf16.msra.mxu0 0
        %268 = vmatprep.subr.bf16.mxu0 0
        %269 = vmatpush1.bf16.msra.mxu0 0
        %270 = vmatprep.subr.bf16.mxu0 0
        %271 = vmatpush1.bf16.msra.mxu0 0
        %272 = vmatprep.subr.bf16.mxu0 0
        %273 = vmatpush1.bf16.msra.mxu0 0
        %274 = vmatprep.subr.bf16.mxu0 0
        %275 = vmatpush1.bf16.msra.mxu0 0
        %276 = vmatprep.subr.bf16.mxu0 0
        %277 = vmatpush1.bf16.msra.mxu0 0
        %278 = vmatprep.subr.bf16.mxu0 0
        %279 = vmatpush1.bf16.msra.mxu0 0
        %280 = vmatprep.subr.bf16.mxu0 0
        %281 = vmatpush1.bf16.msra.mxu0 0
        %282 = vmatprep.subr.bf16.mxu0 0
        %283 = vmatpush1.bf16.msra.mxu0 0
        %284 = vmatprep.subr.bf16.mxu0 0
        %285 = vmatpush1.bf16.msra.mxu0 0
        %286 = vmatprep.subr.bf16.mxu0 0
        %287 = vmatpush1.bf16.msra.mxu0 0
        %288 = vmatprep.subr.bf16.mxu0 0
        %289 = vmatpush1.bf16.msra.mxu0 0
        %290 = vmatprep.subr.bf16.mxu0 0
        %291 = vmatpush1.bf16.msra.mxu0 0
        %292 = vmatprep.mubr.bf16.mxu0 0
        %293 = vmatmul.mubr.bf16.gmra.mrb[0].mxu0 %v258
        %v294 = vpop.f32.mrb[0].mxu0
        %v295 = vadd.f32 %v237, %v294
        %v296 = vpop.f32.mrb[0].mxu0
        %v297 = vpop.f32.mrb[0].mxu0
        %v298 = vadd.f32 %v237, %v297
        %v299 = vpop.f32.mrb[0].mxu0
        %300 = vdwg.mxu0
        // Predicated region
        $region45: #{tpu_custom_call.1} parent=31 // pred_check
          %p301 = pneg %p213
        $region46: #{tpu_custom_call.1} parent=31 // pred_check_branch
          %303 = sbr.rel (%p301) target = $region48
        $region47: #{tpu_custom_call.1} parent=31 // pred_region
          %v304 = vld [vmem:[#allocation2] sm:$0xff]
          %v305 = vld [vmem:[#allocation2 + $0x8] sm:$0xff]
          %306 = vmax.xlane.f32.xlu0 %v295
          %v307 = vpop.xlane.xlu0 %306
          %308 = vmax.xlane.f32.xlu0 %v298
          %v309 = vpop.xlane.xlu0 %308
          %v310 = vmax.f32 %v304, %v307
          %v311 = vmax.f32 %v305, %v309
          %v312 = vld [vmem:[#allocation3] sm:$0xff]
          %v313 = vld [vmem:[#allocation3 + $0x8] sm:$0xff]
          %v314 = vsub.f32 %v304, %v310
          %v315 = vsub.f32 %v305, %v311
          %v316 = vmul.f32 %v314, 1.442695
          %v317 = vpow.pop %v316
          %v318 = vmul.f32 %v315, 1.442695
          %v319 = vpow.pop %v318
          %v320 = vmul.f32 %v312, %v317
          %v321 = vmul.f32 %v313, %v319
          %323 = vset.pattern.permute.xlu0 0
          %324 = vperm.xlu0 %323, %v310
          %v325 = vpop.permute.xlu0 %324
          %328 = vset.pattern.permute.xlu0 0
          %329 = vperm.xlu0 %328, %v311
          %v330 = vpop.permute.xlu0 %329
          %v332 = vsub.f32 %v295, %v325
          %v333 = vsub.f32 %v298, %v330
          %v334 = vmul.f32 %v332, 1.442695
          %v335 = vpow.pop %v334
          %v336 = vmul.f32 %v333, 1.442695
          %v337 = vpow.pop %v336
          %338 = vadd.xlane.f32.xlu0 %v335
          %v339 = vpop.xlane.xlu0 %338
          %340 = vadd.xlane.f32.xlu0 %v337
          %v341 = vpop.xlane.xlu0 %340
          %v342 = vadd.f32 %v320, %v339
          %v343 = vadd.f32 %v321, %v341
          %vm344 = vcmask 7168
          %345 = vst.msk [vmem:[#allocation3] sm:$0xff] %vm344, %v342
          %346 = vst.msk [vmem:[#allocation3 + $0x8] sm:$0xff] %vm344, %v343
          %347 = vst.msk [vmem:[#allocation2] sm:$0xff] %vm344, %v310
          %348 = vst.msk [vmem:[#allocation2 + $0x8] sm:$0xff] %vm344, %v311
        $region48: #{tpu_custom_call.1} parent=31 // pred_fallthru
          _
        // Predicated region
        $region49: #{tpu_custom_call.1} parent=31 // pred_check
          %p349 = pneg %p214
        $region50: #{tpu_custom_call.1} parent=31 // pred_check_branch
          %351 = sbr.rel (%p349) target = $region52
        $region51: #{tpu_custom_call.1} parent=31 // pred_region
          %v352 = vld [vmem:[#allocation2] sm:$0xff]
          %v353 = vld [vmem:[#allocation2 + $0x8] sm:$0xff]
          %v354 = vld [vmem:[#allocation3] sm:$0xff]
          %v355 = vld [vmem:[#allocation3 + $0x8] sm:$0xff]
          %v356 = vlog2.pop %v354
          %v357 = vmul.f32 %v356, 0.6931472
          %v358 = vlog2.pop %v355
          %v359 = vmul.f32 %v358, 0.6931472
          %v360 = vadd.f32 %v352, %v357
          %v361 = vadd.f32 %v353, %v359
          %vm362 = vcmask 7168
          %363 = vst.msk [vmem:[#allocation4] sm:$0xff] %vm362, %v360
          %364 = vst.msk [vmem:[#allocation4 + $0x8] sm:$0xff] %vm362, %v361
        $region52: #{tpu_custom_call.1} parent=31 // pred_fallthru
          _
        %p365 = scmp.ge.s32.totalorder %s24, 1
        // Predicated region
        $region53: #{tpu_custom_call.1} parent=31 // pred_check
          %p366 = pneg %p365
        $region54: #{tpu_custom_call.1} parent=31 // pred_check_branch
          %368 = sbr.rel (%p366) target = $region56
        $region55: #{tpu_custom_call.1} parent=31 // pred_region
          %v369 = vld [vmem:[#allocation4] sm:$0xff]
          %v370 = vld [vmem:[#allocation4 + $0x8] sm:$0xff]
          %372 = vset.pattern.permute.xlu0 0
          %373 = vperm.xlu0 %372, %v369
          %v374 = vpop.permute.xlu0 %373
          %377 = vset.pattern.permute.xlu0 0
          %378 = vperm.xlu0 %377, %v370
          %v379 = vpop.permute.xlu0 %378
          %v381 = vsub.f32 %v295, %v374
          %v382 = vsub.f32 %v298, %v379
          %383 = vst [vmem:[%s206] sm:$0xff] %v381
          %384 = vst [vmem:[%s206 + $0x8] sm:$0xff] %v382
        $region56: #{tpu_custom_call.1} parent=31 // pred_fallthru
          _
        %s385 = sand.u32 %s115, 1
        %s386 = scalar_lea.sflag [#allocation7], %s385
        %s387 = sand.u32 %s115, 1
        %s388 = smul.addr %s387, 16
        %s389 = scalar_lea.vmem [#allocation10], %s388
        // Predicated region
        $region57: #{tpu_custom_call.1} parent=31 // pred_check
          %p390 = pneg %p125
        $region58: #{tpu_custom_call.1} parent=31 // pred_check_branch
          %392 = sbr.rel (%p390) target = $region60
        $region59: #{tpu_custom_call.1} parent=31 // pred_region
          %s393 = ssub.s32 %s24, 1
          %p394 = scmp.gt.s32.totalorder %s393, 0
          %s395 = scalar_select %p394, %s393, 0
          %s396 = smul.u32 2, %s23
          %s398 = ssub.s32 256, 256
          %399 = vsyncadd %s386, %s398
          %s400 = sadd.s32 %s395, %s396
          %s401 = smul.addr %s400, 128
          %s402 = scalar_lea.hbm %s3, %s401
          %s403 = sshll.u32 %s389, 4
          %s404 = int_to_ptr.vmem [resolvable:$true] %s403
          %409 = dma.vmem_to_hbm [thread:$0]  %s404, 256, %s402, %s386, 128, 128, 8
        $region60: #{tpu_custom_call.1} parent=31 // pred_fallthru
          _
      $region32: #{tpu_custom_call.1} parent=5 // pred_fallthru
        _
      %p410 = scmp.le.s32.totalorder 2, %s14
      // Predicated region
      $region61: #{tpu_custom_call.1} parent=5 // pred_check
        %p411 = pneg %p410
      $region62: #{tpu_custom_call.1} parent=5 // pred_check_branch
        %413 = sbr.rel (%p411) target = $region64
      $region63: #{tpu_custom_call.1} parent=5 // pred_region
        %s414 = ssub.s32 %s14, 2
        // Predicated region
        $region65: #{tpu_custom_call.1} parent=63 // pred_check
          %p415 = pneg %p131
        $region66: #{tpu_custom_call.1} parent=63 // pred_check_branch
          %417 = sbr.rel (%p415) target = $region68
        $region67: #{tpu_custom_call.1} parent=63 // pred_region
          %s418 = sand.u32 %s116, 1
          %s419 = scalar_lea.sflag [#allocation7], %s418
          %s420 = sand.u32 %s116, 1
          %s421 = smul.addr %s420, 16
          %s422 = scalar_lea.vmem [#allocation10], %s421
          %423 = dma.done %s419, 256
        $region68: #{tpu_custom_call.1} parent=63 // pred_fallthru
          _
      $region64: #{tpu_custom_call.1} parent=5 // pred_fallthru
        _
    $region6: #{tpu_custom_call.1} parent=1 // loop_footer
      %s18 = sadd.s32 1, %s14
    $region7: #{tpu_custom_call.1} parent=1 // loop_footer_branch
      %13 = sbr.rel target = $region3
    $region8: #{tpu_custom_call.1} parent=1 // loop_exit
      _
    %424 = vsyncpa [#allocation6], 1
    %s425 = scalar_lea.sflag [#allocation6], 1
    %426 = vsyncpa %s425, 1
    %427 = vsyncpa [#allocation9], 1
    %428 = vsyncpa [#allocation7], 1
    %s429 = scalar_lea.sflag [#allocation7], 1
    %430 = vsyncpa %s429, 1

</llo_original>
